<compile_context>
chip_gen: v7x
topology: tpu7x:2x2x1
jax: 0.10.0
libtpu: 0.0.40
codegen_flags: <defaults>
</compile_context>

<pallas_src>
import numpy as np
import jax
import jax.numpy as jnp
from jax.experimental import pallas as pl
from jax.experimental.pallas import tpu as pltpu

# ---- config implied by the module -------------------------------------------
NOISE_DIM   = 16      # forced: CONV upsamples length 2 -> 4 -> 8 -> 16 = noise_dim
GKERNLEN    = 5       # params.gkernlen (odd)
GKERNSIG    = 1.0     # params.gkernsig
BINARY_AMP  = 2.0     # params.binary_amp
LRELU_SLOPE = 0.2
BN_EPS      = 1e-5
MAX_TB      = 2048    # max batch tile on the LANE axis (multiple of 256)

# ---- weight-slab row sections (bf16: row offsets are multiples of 16) --------
_W1_LO, _W1_HI = 0,   16      # W1^T                      (16, 16)
_W2_LO, _W2_HI = 16,  48      # (W2 * bn_scale)^T         (32, 16)
_M1_LO, _M1_HI = 48,  112     # (M1 * bn_scale)^T         (64, 32)
_M2_LO, _M2_HI = 112, 176     # (M2 * bn_scale)^T         (64, 64)
_M3_LO, _M3_HI = 176, 240     # (M3 * bn_scale)^T         (64, 64)
_MG_LO, _MG_HI = 240, 256     # [(M4 @ G)^T | G^T] fused  (16, 80)
WSLAB_ROWS, WSLAB_COLS = 256, 80

# ---- bias-slab row sections (f32: row offsets are multiples of 8) -------------
_B1_LO, _B1_HI   = 0,   16    # FC Linear1 bias           (16)
_HFC_LO, _HFC_HI = 16,  48    # FC BatchNorm shift        (32)
_H1_LO, _H1_HI   = 48,  112   # conv1 BN shift (16ch x 4) (64)
_H2_LO, _H2_HI   = 112, 176   # conv2 BN shift ( 8ch x 8) (64)
_H3_LO, _H3_HI   = 176, 240   # conv3 BN shift ( 4ch x16) (64)
_BG_LO, _BG_HI   = 240, 256   # G^T @ b4                  (16)
BIAS_ROWS        = 256

# fused-tail staging: rows 0:64 = conv3 output, rows 64:80 = residual noise
_CAT_X_ROWS = 64
CAT_ROWS    = 80


# ---- Pallas kernel ------------------------------------------------------------
def generator_kernel(noise_ref, w_ref, bias_ref, out_ref, cat_ref):
    def lrelu(x):
        return jnp.where(x >= 0, x, LRELU_SLOPE * x)

    def bf(x):
        return x.astype(jnp.bfloat16)

    noise = bf(noise_ref[...])                            # (16, TB) bf16

    # weight slab slices (bf16, grid-invariant, fetched once)
    w1  = w_ref[_W1_LO:_W1_HI, :16]                       # (16, 16)
    w2  = w_ref[_W2_LO:_W2_HI, :16]                       # (32, 16)
    m1  = w_ref[_M1_LO:_M1_HI, :32]                       # (64, 32)
    m2  = w_ref[_M2_LO:_M2_HI, :64]                       # (64, 64)
    m3  = w_ref[_M3_LO:_M3_HI, :64]                       # (64, 64)
    mgt = w_ref[_MG_LO:_MG_HI, :CAT_ROWS]                 # (16, 80)

    # bias slab slices (f32 column vectors, broadcast over lanes)
    b1  = bias_ref[_B1_LO:_B1_HI, :]
    hfc = bias_ref[_HFC_LO:_HFC_HI, :]
    h1  = bias_ref[_H1_LO:_H1_HI, :]
    h2  = bias_ref[_H2_LO:_H2_HI, :]
    h3  = bias_ref[_H3_LO:_H3_HI, :]
    bg  = bias_ref[_BG_LO:_BG_HI, :]

    # ---- FC: Linear -> LeakyReLU -> Dropout(eval: id) -> Linear(no bias)
    #          -> BatchNorm1d(32) -> LeakyReLU      (BN scale folded into W2)
    h = bf(lrelu(jnp.dot(w1, noise, preferred_element_type=jnp.float32) + b1))   # (16, TB)
    h = bf(lrelu(jnp.dot(w2, h,     preferred_element_type=jnp.float32) + hfc))  # (32, TB)

    # h is the channel-major flattening of net.view(-1, 16, 2)  (C=16, L=2)

    # ---- CONV: 3 x [periodic ConvT(stride 2, no bias) -> BN -> LeakyReLU]
    #            (BN scales folded into M1..M3)
    x = bf(lrelu(jnp.dot(m1, h, preferred_element_type=jnp.float32) + h1))       # (64, TB) 16x4
    x = bf(lrelu(jnp.dot(m2, x, preferred_element_type=jnp.float32) + h2))       # (64, TB)  8x8
    x = bf(lrelu(jnp.dot(m3, x, preferred_element_type=jnp.float32) + h3))       # (64, TB)  4x16

    # ---- fused tail:  G^T @ (M4^T x + b4 + noise)
    #      = [ (M4 G)^T | G^T ] @ [x ; noise] + G^T b4     (single MXU issue)
    cat_ref[0:_CAT_X_ROWS, :]        = x
    cat_ref[_CAT_X_ROWS:CAT_ROWS, :] = noise
    y = jnp.dot(mgt, cat_ref[...], preferred_element_type=jnp.float32) + bg      # (16, TB)

    # tanh epilogue in f32 (safe on v5e; tiny), lane-dense bf16 store
    out_ref[...] = (jnp.tanh(y * BINARY_AMP) * 1.05).astype(out_ref.dtype)


# ---- host-side parameter construction (glue) -----------------------------------
def gkern1d(kernlen, sig):
    x = np.arange(kernlen, dtype=np.float64) - (kernlen - 1) / 2.0
    g = np.exp(-0.5 * (x / sig) ** 2)
    return (g / g.sum()).astype(np.float32)


def periodic_convT_matrix(W, L_in, stride):
    """Dense matrix of a periodic ConvTranspose1d.
    W: (Cin, Cout, k) (torch ConvTranspose1d weight layout). Output length = stride*L_in.
    Acts on row vectors: (B, Cin*L_in) @ M -> (B, Cout*L_out), channel-major flattening.
    """
    Cin, Cout, k = W.shape
    Lo = stride * L_in
    pad = (k - 1) // 2
    M = np.zeros((Cin * L_in, Cout * Lo), np.float32)
    for ci in range(Cin):
        for l in range(L_in):
            for co in range(Cout):
                for r in range(k):
                    j = (stride * l + r - pad) % Lo
                    M[ci * L_in + l, co * Lo + j] += W[ci, co, r]
    return M


def circular_conv_matrix(g, L):
    """Dense matrix of conv1d with circular padding (kernel g, length preserved)."""
    k = g.shape[0]
    pad = (k - 1) // 2
    G = np.zeros((L, L), np.float32)
    for j in range(L):
        for r in range(k):
            G[(j + r - pad) % L, j] += g[r]
    return G


def bn_fold(gamma, beta, mean, var, L):
    """Eval-mode BatchNorm folded to per-element scale/shift over (C*L) rows."""
    scale = gamma / np.sqrt(var + BN_EPS)
    shift = beta - mean * scale
    return (np.repeat(scale, L)[None, :].astype(np.float32),    # (1, C*L)
            np.repeat(shift, L)[None, :].astype(np.float32))    # (1, C*L)


def make_params():
    rng = np.random.default_rng(42)

    def rnd(*shape, scale=0.1):
        return (rng.standard_normal(shape) * scale).astype(np.float32)

    def bn_stats(c):
        gamma = 1.0 + rnd(c, scale=0.2)
        beta = rnd(c, scale=0.1)
        mean = rnd(c, scale=0.1)
        var = 1.0 + np.abs(rnd(c, scale=0.1))
        return gamma, beta, mean, var

    # FC
    W1 = rnd(NOISE_DIM, 16, scale=0.3)
    b1 = rnd(1, 16, scale=0.1)
    W2 = rnd(16, 32, scale=0.3)
    sfc, hfc = bn_fold(*bn_stats(32), L=1)

    # CONV (torch ConvTranspose1d weights: (Cin, Cout, k))
    Wc1 = rnd(16, 16, 5, scale=0.2)
    Wc2 = rnd(16, 8, 5, scale=0.2)
    Wc3 = rnd(8, 4, 5, scale=0.2)
    Wc4 = rnd(4, 1, 5, scale=0.2)
    bc4 = rnd(1, scale=0.1)

    M1 = periodic_convT_matrix(Wc1, L_in=2, stride=2)    # (32,  64)
    s1, h1 = bn_fold(*bn_stats(16), L=4)
    M2 = periodic_convT_matrix(Wc2, L_in=4, stride=2)    # (64,  64)
    s2, h2 = bn_fold(*bn_stats(8), L=8)
    M3 = periodic_convT_matrix(Wc3, L_in=8, stride=2)    # (64,  64)
    s3, h3 = bn_fold(*bn_stats(4), L=16)
    M4 = periodic_convT_matrix(Wc4, L_in=16, stride=1)   # (64,  16)
    b4 = np.full((1, NOISE_DIM), bc4[0], np.float32)

    G = circular_conv_matrix(gkern1d(GKERNLEN, GKERNSIG), NOISE_DIM)   # (16, 16)

    # ---- fold + transpose for the (features, batch) lane-dense layout ----------
    W1T   = W1.T                         # (16, 16)
    W2fT  = (W2 * sfc).T                 # (32, 16)  BN scale folded
    M1fT  = (M1 * s1).T                  # (64, 32)
    M2fT  = (M2 * s2).T                  # (64, 64)
    M3fT  = (M3 * s3).T                  # (64, 64)
    MGT   = (M4 @ G).T                   # (16, 64)  ConvT4 + smoothing fused
    GT    = G.T                          # (16, 16)  smoothing of residual noise
    MGT_GT = np.concatenate([MGT, GT], axis=1)          # (16, 80)  fused tail matrix

    # ---- single consolidated bf16 weight slab (256, 80) ------------------------
    wslab = np.zeros((WSLAB_ROWS, WSLAB_COLS), np.float32)
    wslab[_W1_LO:_W1_HI, :16] = W1T
    wslab[_W2_LO:_W2_HI, :16] = W2fT
    wslab[_M1_LO:_M1_HI, :32] = M1fT
    wslab[_M2_LO:_M2_HI, :64] = M2fT
    wslab[_M3_LO:_M3_HI, :64] = M3fT
    wslab[_MG_LO:_MG_HI, :80] = MGT_GT

    # ---- single consolidated f32 bias/shift slab (256, 1) ----------------------
    bias_all = np.concatenate(
        [b1.T, hfc.T, h1.T, h2.T, h3.T, G.T @ b4.T], axis=0).astype(np.float32)
    assert bias_all.shape == (BIAS_ROWS, 1)

    return (jnp.asarray(wslab, dtype=jnp.bfloat16),
            jnp.asarray(bias_all, dtype=jnp.float32))


# ---- tiling policy --------------------------------------------------------------
def _choose_tiling(batch):
    """Pick (tile, padded_batch). Tile up to MAX_TB lanes (amortize per-step
    overhead); batches > MAX_TB give >= 2 grid steps so the 'parallel' batch
    axis can shard across v7x's two TensorCores."""
    bp = ((batch + 255) // 256) * 256           # lane/MXU-aligned padded batch
    if bp <= MAX_TB:
        tb = bp
    else:
        tb = MAX_TB
        bp = ((bp + tb - 1) // tb) * tb
    return tb, bp


# ---- wrappers --------------------------------------------------------------------
def generator_forward_lanes(noise_t, weights, out_dtype=jnp.bfloat16):
    """Performance path: noise_t is (noise_dim, B) features-major (batch on lanes).
    Returns (noise_dim, B) in out_dtype (bf16 by default -> half the HBM writes).
    No host-side transposes."""
    nd, B = noise_t.shape
    assert nd == NOISE_DIM
    wslab, bias = weights

    tb, bp = _choose_tiling(B)
    if bp != B:
        noise_t = jnp.pad(noise_t, ((0, 0), (0, bp - B)))

    out_t = pl.pallas_call(
        generator_kernel,
        out_shape=jax.ShapeDtypeStruct((nd, bp), out_dtype),
        grid_spec=pltpu.PrefetchScalarGridSpec(
            num_scalar_prefetch=0,
            grid=(bp // tb,),
            in_specs=[
                pl.BlockSpec((nd, tb), lambda i: (0, i)),           # noise tile
                pl.BlockSpec(wslab.shape, lambda i: (0, 0)),        # weight slab (invariant)
                pl.BlockSpec(bias.shape, lambda i: (0, 0)),         # bias slab (invariant)
            ],
            out_specs=pl.BlockSpec((nd, tb), lambda i: (0, i)),
            scratch_shapes=[pltpu.VMEM((CAT_ROWS, tb), jnp.bfloat16)],
        ),
        compiler_params=pltpu.CompilerParams(dimension_semantics=("parallel",)),
    )(noise_t, wslab, bias)

    return out_t[:, :B]


def generator_forward(noise, weights, out_dtype=jnp.float32):
    """PyTorch-shaped compatibility entry: noise (B, noise_dim) -> (B, 1, noise_dim).
    The transposes here are layout plumbing only; perf-critical callers should
    produce/consume the (noise_dim, B) layout via generator_forward_lanes."""
    B, nd = noise.shape
    assert nd == NOISE_DIM
    out_t = generator_forward_lanes(noise.T, weights)
    return out_t.T.astype(out_dtype).reshape(B, 1, nd)


if __name__ == "__main__":
    B = 16
    weights = make_params()

    # Generate noise directly in the lane-major (noise_dim, B) layout so the
    # hot path has zero host-side transposes.
    noise_t = jax.random.normal(jax.random.PRNGKey(0), (NOISE_DIM, B), dtype=jnp.float32)

    out_t = generator_forward_lanes(noise_t, weights)     # (16, B) bf16
    out_t = jax.block_until_ready(out_t)

    # tiny module-shaped view for verification only (not on the perf path)
    out = out_t.astype(jnp.float32).T.reshape(B, 1, NOISE_DIM)

    assert out.shape == (B, 1, NOISE_DIM), out.shape
    assert bool(jnp.all(jnp.isfinite(out)))
    assert bool(jnp.all(jnp.abs(out) <= 1.05 + 1e-3))     # tanh(.)*1.05 bound
    print("KERNEL_OK")
</pallas_src>

<mosaic_0001>
module attributes {stable_mosaic.version = 11 : i64} {
  func.func @generator_kernel(%arg0: i32, %arg1: memref<16x256xf32, #tpu.memory_space<vmem>>, %arg2: memref<256x80xbf16, #tpu.memory_space<vmem>>, %arg3: memref<256x1xf32, #tpu.memory_space<vmem>>, %arg4: memref<16x256xbf16, #tpu.memory_space<vmem>>, %arg5: memref<80x256xbf16, #tpu.memory_space<vmem>>) attributes {dimension_semantics = [#tpu.dimension_semantics<parallel>], iteration_bounds = array<i64: 1>, scalar_prefetch = 0 : i64, scratch_operands = 1 : i64, tpu.core_type = #tpu.core_type<tc>, window_params = [{transform_indices = @transform_0, window_bounds = array<i64: 16, 256>}, {pipeline_mode = #tpu.pipeline_mode<synchronous>, transform_indices = @transform_1, window_bounds = array<i64: 256, 80>}, {pipeline_mode = #tpu.pipeline_mode<synchronous>, transform_indices = @transform_2, window_bounds = array<i64: 256, 1>}, {transform_indices = @transform_3, window_bounds = array<i64: 16, 256>}]} {
    %c0 = arith.constant 0 : index
    %c0_0 = arith.constant 0 : index
    %0 = vector.load %arg1[%c0, %c0_0] : memref<16x256xf32, #tpu.memory_space<vmem>>, vector<16x256xf32>
    %1 = arith.truncf %0 : vector<16x256xf32> to vector<16x256xbf16>
    %c0_1 = arith.constant 0 : index
    %c0_2 = arith.constant 0 : index
    %2 = vector.load %arg2[%c0_1, %c0_2] : memref<256x80xbf16, #tpu.memory_space<vmem>>, vector<16x16xbf16>
    %c16 = arith.constant 16 : index
    %c0_3 = arith.constant 0 : index
    %3 = vector.load %arg2[%c16, %c0_3] : memref<256x80xbf16, #tpu.memory_space<vmem>>, vector<32x16xbf16>
    %c48 = arith.constant 48 : index
    %c0_4 = arith.constant 0 : index
    %4 = vector.load %arg2[%c48, %c0_4] : memref<256x80xbf16, #tpu.memory_space<vmem>>, vector<64x32xbf16>
    %c112 = arith.constant 112 : index
    %c0_5 = arith.constant 0 : index
    %5 = vector.load %arg2[%c112, %c0_5] : memref<256x80xbf16, #tpu.memory_space<vmem>>, vector<64x64xbf16>
    %c176 = arith.constant 176 : index
    %c0_6 = arith.constant 0 : index
    %6 = vector.load %arg2[%c176, %c0_6] : memref<256x80xbf16, #tpu.memory_space<vmem>>, vector<64x64xbf16>
    %c240 = arith.constant 240 : index
    %c0_7 = arith.constant 0 : index
    %7 = vector.load %arg2[%c240, %c0_7] : memref<256x80xbf16, #tpu.memory_space<vmem>>, vector<16x80xbf16>
    %c0_8 = arith.constant 0 : index
    %c0_9 = arith.constant 0 : index
    %8 = vector.load %arg3[%c0_8, %c0_9] : memref<256x1xf32, #tpu.memory_space<vmem>>, vector<16x1xf32>
    %c16_10 = arith.constant 16 : index
    %c0_11 = arith.constant 0 : index
    %9 = vector.load %arg3[%c16_10, %c0_11] : memref<256x1xf32, #tpu.memory_space<vmem>>, vector<32x1xf32>
    %c48_12 = arith.constant 48 : index
    %c0_13 = arith.constant 0 : index
    %10 = vector.load %arg3[%c48_12, %c0_13] : memref<256x1xf32, #tpu.memory_space<vmem>>, vector<64x1xf32>
    %c112_14 = arith.constant 112 : index
    %c0_15 = arith.constant 0 : index
    %11 = vector.load %arg3[%c112_14, %c0_15] : memref<256x1xf32, #tpu.memory_space<vmem>>, vector<64x1xf32>
    %c176_16 = arith.constant 176 : index
    %c0_17 = arith.constant 0 : index
    %12 = vector.load %arg3[%c176_16, %c0_17] : memref<256x1xf32, #tpu.memory_space<vmem>>, vector<64x1xf32>
    %c240_18 = arith.constant 240 : index
    %c0_19 = arith.constant 0 : index
    %13 = vector.load %arg3[%c240_18, %c0_19] : memref<256x1xf32, #tpu.memory_space<vmem>>, vector<16x1xf32>
    %cst = arith.constant dense<0.000000e+00> : vector<16x256xf32>
    %14 = tpu.matmul %2, %1, %cst {dimension_numbers = #tpu.dot_dimension_numbers<[1], [0], [0], [1], [0, 0, 1, 1], [], []>} : vector<16x16xbf16>, vector<16x256xbf16>, vector<16x256xf32> -> vector<16x256xf32>
    %15 = vector.broadcast %8 : vector<16x1xf32> to vector<16x256xf32>
    %16 = arith.addf %14, %15 : vector<16x256xf32>
    %cst_20 = arith.constant 0.000000e+00 : f32
    %17 = vector.broadcast %cst_20 : f32 to vector<16x256xf32>
    %18 = arith.cmpf oge, %16, %17 : vector<16x256xf32>
    %cst_21 = arith.constant 2.000000e-01 : f32
    %19 = vector.broadcast %cst_21 : f32 to vector<16x256xf32>
    %20 = arith.mulf %19, %16 : vector<16x256xf32>
    %21 = arith.select %18, %16, %20 : vector<16x256xi1>, vector<16x256xf32>
    %22 = arith.truncf %21 : vector<16x256xf32> to vector<16x256xbf16>
    %cst_22 = arith.constant dense<0.000000e+00> : vector<32x256xf32>
    %23 = tpu.matmul %3, %22, %cst_22 {dimension_numbers = #tpu.dot_dimension_numbers<[1], [0], [0], [1], [0, 0, 1, 1], [], []>} : vector<32x16xbf16>, vector<16x256xbf16>, vector<32x256xf32> -> vector<32x256xf32>
    %24 = vector.broadcast %9 : vector<32x1xf32> to vector<32x256xf32>
    %25 = arith.addf %23, %24 : vector<32x256xf32>
    %cst_23 = arith.constant 0.000000e+00 : f32
    %26 = vector.broadcast %cst_23 : f32 to vector<32x256xf32>
    %27 = arith.cmpf oge, %25, %26 : vector<32x256xf32>
    %cst_24 = arith.constant 2.000000e-01 : f32
    %28 = vector.broadcast %cst_24 : f32 to vector<32x256xf32>
    %29 = arith.mulf %28, %25 : vector<32x256xf32>
    %30 = arith.select %27, %25, %29 : vector<32x256xi1>, vector<32x256xf32>
    %31 = arith.truncf %30 : vector<32x256xf32> to vector<32x256xbf16>
    %cst_25 = arith.constant dense<0.000000e+00> : vector<64x256xf32>
    %32 = tpu.matmul %4, %31, %cst_25 {dimension_numbers = #tpu.dot_dimension_numbers<[1], [0], [0], [1], [0, 0, 1, 1], [], []>} : vector<64x32xbf16>, vector<32x256xbf16>, vector<64x256xf32> -> vector<64x256xf32>
    %33 = vector.broadcast %10 : vector<64x1xf32> to vector<64x256xf32>
    %34 = arith.addf %32, %33 : vector<64x256xf32>
    %cst_26 = arith.constant 0.000000e+00 : f32
    %35 = vector.broadcast %cst_26 : f32 to vector<64x256xf32>
    %36 = arith.cmpf oge, %34, %35 : vector<64x256xf32>
    %cst_27 = arith.constant 2.000000e-01 : f32
    %37 = vector.broadcast %cst_27 : f32 to vector<64x256xf32>
    %38 = arith.mulf %37, %34 : vector<64x256xf32>
    %39 = arith.select %36, %34, %38 : vector<64x256xi1>, vector<64x256xf32>
    %40 = arith.truncf %39 : vector<64x256xf32> to vector<64x256xbf16>
    %cst_28 = arith.constant dense<0.000000e+00> : vector<64x256xf32>
    %41 = tpu.matmul %5, %40, %cst_28 {dimension_numbers = #tpu.dot_dimension_numbers<[1], [0], [0], [1], [0, 0, 1, 1], [], []>} : vector<64x64xbf16>, vector<64x256xbf16>, vector<64x256xf32> -> vector<64x256xf32>
    %42 = vector.broadcast %11 : vector<64x1xf32> to vector<64x256xf32>
    %43 = arith.addf %41, %42 : vector<64x256xf32>
    %cst_29 = arith.constant 0.000000e+00 : f32
    %44 = vector.broadcast %cst_29 : f32 to vector<64x256xf32>
    %45 = arith.cmpf oge, %43, %44 : vector<64x256xf32>
    %cst_30 = arith.constant 2.000000e-01 : f32
    %46 = vector.broadcast %cst_30 : f32 to vector<64x256xf32>
    %47 = arith.mulf %46, %43 : vector<64x256xf32>
    %48 = arith.select %45, %43, %47 : vector<64x256xi1>, vector<64x256xf32>
    %49 = arith.truncf %48 : vector<64x256xf32> to vector<64x256xbf16>
    %cst_31 = arith.constant dense<0.000000e+00> : vector<64x256xf32>
    %50 = tpu.matmul %6, %49, %cst_31 {dimension_numbers = #tpu.dot_dimension_numbers<[1], [0], [0], [1], [0, 0, 1, 1], [], []>} : vector<64x64xbf16>, vector<64x256xbf16>, vector<64x256xf32> -> vector<64x256xf32>
    %51 = vector.broadcast %12 : vector<64x1xf32> to vector<64x256xf32>
    %52 = arith.addf %50, %51 : vector<64x256xf32>
    %cst_32 = arith.constant 0.000000e+00 : f32
    %53 = vector.broadcast %cst_32 : f32 to vector<64x256xf32>
    %54 = arith.cmpf oge, %52, %53 : vector<64x256xf32>
    %cst_33 = arith.constant 2.000000e-01 : f32
    %55 = vector.broadcast %cst_33 : f32 to vector<64x256xf32>
    %56 = arith.mulf %55, %52 : vector<64x256xf32>
    %57 = arith.select %54, %52, %56 : vector<64x256xi1>, vector<64x256xf32>
    %58 = arith.truncf %57 : vector<64x256xf32> to vector<64x256xbf16>
    %c0_34 = arith.constant 0 : index
    %c0_35 = arith.constant 0 : index
    %59 = vector.load %arg5[%c0_34, %c0_35] : memref<80x256xbf16, #tpu.memory_space<vmem>>, vector<64x256xbf16>
    tpu.vector_store %arg5[%c0_34, %c0_35], %58 {strides = array<i32>} : memref<80x256xbf16, #tpu.memory_space<vmem>>, vector<64x256xbf16>,
    %c64 = arith.constant 64 : index
    %c0_36 = arith.constant 0 : index
    %60 = vector.load %arg5[%c64, %c0_36] : memref<80x256xbf16, #tpu.memory_space<vmem>>, vector<16x256xbf16>
    tpu.vector_store %arg5[%c64, %c0_36], %1 {strides = array<i32>} : memref<80x256xbf16, #tpu.memory_space<vmem>>, vector<16x256xbf16>,
    %c0_37 = arith.constant 0 : index
    %c0_38 = arith.constant 0 : index
    %61 = vector.load %arg5[%c0_37, %c0_38] : memref<80x256xbf16, #tpu.memory_space<vmem>>, vector<80x256xbf16>
    %cst_39 = arith.constant dense<0.000000e+00> : vector<16x256xf32>
    %62 = tpu.matmul %7, %61, %cst_39 {dimension_numbers = #tpu.dot_dimension_numbers<[1], [0], [0], [1], [0, 0, 1, 1], [], []>} : vector<16x80xbf16>, vector<80x256xbf16>, vector<16x256xf32> -> vector<16x256xf32>
    %63 = vector.broadcast %13 : vector<16x1xf32> to vector<16x256xf32>
    %64 = arith.addf %62, %63 : vector<16x256xf32>
    %cst_40 = arith.constant 2.000000e+00 : f32
    %65 = vector.broadcast %cst_40 : f32 to vector<16x256xf32>
    %66 = arith.mulf %64, %65 : vector<16x256xf32>
    %67 = math.tanh %66 : vector<16x256xf32>
    %cst_41 = arith.constant 1.050000e+00 : f32
    %68 = vector.broadcast %cst_41 : f32 to vector<16x256xf32>
    %69 = arith.mulf %67, %68 : vector<16x256xf32>
    %70 = arith.truncf %69 : vector<16x256xf32> to vector<16x256xbf16>
    %c0_42 = arith.constant 0 : index
    %c0_43 = arith.constant 0 : index
    %71 = vector.load %arg4[%c0_42, %c0_43] : memref<16x256xbf16, #tpu.memory_space<vmem>>, vector<16x256xbf16>
    tpu.vector_store %arg4[%c0_42, %c0_43], %70 {strides = array<i32>} : memref<16x256xbf16, #tpu.memory_space<vmem>>, vector<16x256xbf16>,
    return
  }
  func.func @transform_0(%arg0: i32) -> (i32, i32) {
    %c0_i32 = arith.constant 0 : i32
    %c0_i32_0 = arith.constant 0 : i32
    return %c0_i32, %arg0 : i32, i32
  }
  func.func @transform_1(%arg0: i32) -> (i32, i32) {
    %c0_i32 = arith.constant 0 : i32
    %c0_i32_0 = arith.constant 0 : i32
    %c0_i32_1 = arith.constant 0 : i32
    return %c0_i32, %c0_i32_0 : i32, i32
  }
  func.func @transform_2(%arg0: i32) -> (i32, i32) {
    %c0_i32 = arith.constant 0 : i32
    %c0_i32_0 = arith.constant 0 : i32
    %c0_i32_1 = arith.constant 0 : i32
    return %c0_i32, %c0_i32_0 : i32, i32
  }
  func.func @transform_3(%arg0: i32) -> (i32, i32) {
    %c0_i32 = arith.constant 0 : i32
    %c0_i32_0 = arith.constant 0 : i32
    return %c0_i32, %arg0 : i32, i32
  }
}

</mosaic_0001>

<llo_original>
// kernel: tpu_custom_call.1
$region0: #{tpu_custom_call.1}
  #allocation0 [shape = 'u32[]', space=smem, size = 0x4, offset = 0x4, fixed_abs, tag = 'smem constant byte address 0x4 - core index']
  #allocation1 [shape = 'u32[144,128]{1,0:T(1,128)}', space=vmem, size = 0x12000, scoped, tag = 'internal scratch']
  #allocation2 [shape = 'bf16[80,256]{1,0:T(16,128)(2,1)}', space=vmem, size = 0xa000, scoped, tag = 'scratch operand']
  %s0 = inlined_call_operand.vmem [shape: f32[16,256], index: 0, kind: input, shape index: {}]
  %s1 = inlined_call_operand.vmem [shape: bf16[256,80], index: 1, kind: input, shape index: {}]
  %s2 = inlined_call_operand.vmem [shape: f32[256,1], index: 2, kind: input, shape index: {}]
  %s3 = inlined_call_operand.hbm [shape: bf16[16,256], index: 3, kind: output, shape index: {}]
  %s4 = sld [smem:[#allocation0]]
  $region22: #{tpu_custom_call.1} parent=0
    _
  %s6 = ssub.s32 1, %s4
  %s7 = scalar_select 0, %s6, %s4
  $region1: #{tpu_custom_call.1} parent=0
    #allocation3 [shape = 'u8[8192]{0}', space=vmem, size = 0x2000, scoped, tag = 'output window, operand 0, single buffered']
    #allocation4 [shape = 's32[1]{0}', space=sflag, size = 0x4, scoped, tag = 'scoped memory for tpu_custom_call.1']
    %8 = vsyncpa [#allocation4], 0
    // Predicated region
    $region2: #{tpu_custom_call.1} parent=1 // pred_check
      _
    $region3: #{tpu_custom_call.1} parent=1 // pred_check_branch
      %10 = sbr.rel (0) target = $region5
    $region4: #{tpu_custom_call.1} parent=1 // pred_region
      _
    $region5: #{tpu_custom_call.1} parent=1 // pred_fallthru
      _
    // Predicated region
    $region6: #{tpu_custom_call.1} parent=1 // pred_check
      _
    $region7: #{tpu_custom_call.1} parent=1 // pred_check_branch
      %12 = sbr.rel (0) target = $region9
    $region8: #{tpu_custom_call.1} parent=1 // pred_region
      _
    $region9: #{tpu_custom_call.1} parent=1 // pred_fallthru
      _
    // Predicated region
    $region10: #{tpu_custom_call.1} parent=1 // pred_check
      _
    $region11: #{tpu_custom_call.1} parent=1 // pred_check_branch
      %14 = sbr.rel (0) target = $region13
    $region12: #{tpu_custom_call.1} parent=1 // pred_region
      _
    $region13: #{tpu_custom_call.1} parent=1 // pred_fallthru
      _
    %v16 = vld [vmem:[%s0] sm:$0xff]
    %v17 = vld [vmem:[%s0 + $0x8] sm:$0xff]
    %v18 = vld [vmem:[%s0 + $0x10] sm:$0xff]
    %v19 = vld [vmem:[%s0 + $0x18] sm:$0xff]
    %v20 = vpack.c.bf16 %v18, %v16
    %v21 = vpack.c.bf16 %v19, %v17
    %v22 = vld [vmem:[%s1] sm:$0xf]
    %v23 = vld [vmem:[%s1 + $0x4] sm:$0xf]
    %v24 = vld [vmem:[%s1 + $0x8] sm:$0xf]
    %v25 = vld [vmem:[%s1 + $0xc] sm:$0xf]
    %v26 = vld [vmem:[%s1 + $0x10] sm:$0xf]
    %v27 = vld [vmem:[%s1 + $0x14] sm:$0xf]
    %v28 = vld [vmem:[%s1 + $0x18] sm:$0xf]
    %v29 = vld [vmem:[%s1 + $0x1c] sm:$0xf]
    %v30 = vld [vmem:[%s1 + $0x20] sm:$0xf]
    %v31 = vld [vmem:[%s1 + $0x24] sm:$0xf]
    %v32 = vld [vmem:[%s1 + $0x28] sm:$0xf]
    %v33 = vld [vmem:[%s1 + $0x2c] sm:$0xf]
    %v34 = vld [vmem:[%s1 + $0x30] sm:$0xf]
    %v35 = vld [vmem:[%s1 + $0x34] sm:$0xf]
    %v36 = vld [vmem:[%s1 + $0x38] sm:$0xf]
    %v37 = vld [vmem:[%s1 + $0x3c] sm:$0xf]
    %v38 = vld [vmem:[%s1 + $0x40] sm:$0xf]
    %v39 = vld [vmem:[%s1 + $0x44] sm:$0xf]
    %v40 = vld [vmem:[%s1 + $0x48] sm:$0xf]
    %v41 = vld [vmem:[%s1 + $0x4c] sm:$0xf]
    %v42 = vld [vmem:[%s1 + $0x50] sm:$0xf]
    %v43 = vld [vmem:[%s1 + $0x54] sm:$0xf]
    %v44 = vld [vmem:[%s1 + $0x58] sm:$0xf]
    %v45 = vld [vmem:[%s1 + $0x5c] sm:$0xf]
    %v46 = vld [vmem:[%s1 + $0x60] sm:$0xf]
    %v47 = vld [vmem:[%s1 + $0x64] sm:$0xf]
    %v48 = vld [vmem:[%s1 + $0x68] sm:$0xf]
    %v49 = vld [vmem:[%s1 + $0x6c] sm:$0xf]
    %v50 = vld [vmem:[%s1 + $0x70] sm:$0xf]
    %v51 = vld [vmem:[%s1 + $0x74] sm:$0xf]
    %v52 = vld [vmem:[%s1 + $0x78] sm:$0xf]
    %v53 = vld [vmem:[%s1 + $0x7c] sm:$0xf]
    %v54 = vld [vmem:[%s2] sm:$0xff]
    %v55 = vld [vmem:[%s2 + $0x8] sm:$0xff]
    %v56 = vld [vmem:[%s2 + $0x10] sm:$0xff]
    %v57 = vld [vmem:[%s2 + $0x18] sm:$0xff]
    %v58 = vld [vmem:[%s2 + $0x20] sm:$0xff]
    %v59 = vld [vmem:[%s2 + $0x28] sm:$0xff]
    %v60 = vld [vmem:[%s2 + $0x30] sm:$0xff]
    %v61 = vld [vmem:[%s2 + $0x38] sm:$0xff]
    %v62 = vld [vmem:[%s2 + $0x40] sm:$0xff]
    %v63 = vld [vmem:[%s2 + $0x48] sm:$0xff]
    %v64 = vld [vmem:[%s2 + $0x50] sm:$0xff]
    %v65 = vld [vmem:[%s2 + $0x58] sm:$0xff]
    %v66 = vld [vmem:[%s2 + $0x60] sm:$0xff]
    %v67 = vld [vmem:[%s2 + $0x68] sm:$0xff]
    %v68 = vld [vmem:[%s2 + $0x70] sm:$0xff]
    %v69 = vld [vmem:[%s2 + $0x78] sm:$0xff]
    %v70 = vld [vmem:[%s2 + $0x80] sm:$0xff]
    %v71 = vld [vmem:[%s2 + $0x88] sm:$0xff]
    %v72 = vld [vmem:[%s2 + $0x90] sm:$0xff]
    %v73 = vld [vmem:[%s2 + $0x98] sm:$0xff]
    %v74 = vld [vmem:[%s2 + $0xa0] sm:$0xff]
    %v75 = vld [vmem:[%s2 + $0xa8] sm:$0xff]
    %v76 = vld [vmem:[%s2 + $0xb0] sm:$0xff]
    %v77 = vld [vmem:[%s2 + $0xb8] sm:$0xff]
    %v78 = vld [vmem:[%s2 + $0xc0] sm:$0xff]
    %v79 = vld [vmem:[%s2 + $0xc8] sm:$0xff]
    %v80 = vld [vmem:[%s2 + $0xd0] sm:$0xff]
    %v81 = vld [vmem:[%s2 + $0xd8] sm:$0xff]
    %v82 = vld [vmem:[%s2 + $0xe0] sm:$0xff]
    %v83 = vld [vmem:[%s2 + $0xe8] sm:$0xff]
    %v84 = vld [vmem:[%s2 + $0xf0] sm:$0xff]
    %v85 = vld [vmem:[%s2 + $0xf8] sm:$0xff]
    %87 = vset.pattern.permute.xlu0 0
    %88 = vperm.xlu0 %87, %v54
    %v89 = vpop.permute.xlu0 %88
    %92 = vset.pattern.permute.xlu0 0
    %93 = vperm.xlu0 %92, %v55
    %v94 = vpop.permute.xlu0 %93
    %v98 = vunpack.c.l.b16 %v22
    %v99 = vunpack.c.l.b16 %v23
    %v100 = vpack.c.b16 %v99, %v98
    %vm101 = vcmask 130048
    %v103 = vsel %vm101, %v100, 0
    %105 = vmatprep.subr.bf16.mxu0 %v21
    %106 = vmatpush1.bf16.msra.mxu0 %v20
    %107 = vmatprep.subr.bf16.mxu0 0
    %108 = vmatpush1.bf16.msra.mxu0 0
    %109 = vmatprep.subr.bf16.mxu0 0
    %110 = vmatpush1.bf16.msra.mxu0 0
    %111 = vmatprep.subr.bf16.mxu0 0
    %112 = vmatpush1.bf16.msra.mxu0 0
    %113 = vmatprep.subr.bf16.mxu0 0
    %114 = vmatpush1.bf16.msra.mxu0 0
    %115 = vmatprep.subr.bf16.mxu0 0
    %116 = vmatpush1.bf16.msra.mxu0 0
    %117 = vmatprep.subr.bf16.mxu0 0
    %118 = vmatpush1.bf16.msra.mxu0 0
    %119 = vmatprep.subr.bf16.mxu0 0
    %120 = vmatpush1.bf16.msra.mxu0 0
    %121 = vmatprep.subr.bf16.mxu0 0
    %122 = vmatpush1.bf16.msra.mxu0 0
    %123 = vmatprep.subr.bf16.mxu0 0
    %124 = vmatpush1.bf16.msra.mxu0 0
    %125 = vmatprep.subr.bf16.mxu0 0
    %126 = vmatpush1.bf16.msra.mxu0 0
    %127 = vmatprep.subr.bf16.mxu0 0
    %128 = vmatpush1.bf16.msra.mxu0 0
    %129 = vmatprep.subr.bf16.mxu0 0
    %130 = vmatpush1.bf16.msra.mxu0 0
    %131 = vmatprep.subr.bf16.mxu0 0
    %132 = vmatpush1.bf16.msra.mxu0 0
    %133 = vmatprep.subr.bf16.mxu0 0
    %134 = vmatpush1.bf16.msra.mxu0 0
    %135 = vmatprep.subr.bf16.mxu0 0
    %136 = vmatpush1.bf16.msra.mxu0 0
    %137 = vmatprep.mubr.bf16.mxu0 0
    %138 = vmatmul.mubr.bf16.gmra.mrb[0].mxu0 %v103
    %v139 = vpop.f32.mrb[0].mxu0
    %v140 = vadd.f32 %v89, %v139
    %v141 = vpop.f32.mrb[0].mxu0
    %v142 = vadd.f32 %v89, %v141
    %v143 = vpop.f32.mrb[0].mxu0
    %v144 = vadd.f32 %v94, %v143
    %v145 = vpop.f32.mrb[0].mxu0
    %v146 = vadd.f32 %v94, %v145
    %147 = vdwg.mxu0
    %vm148 = vcmp.ge.f32.partialorder %v140, 0.0
    %vm149 = vcmp.ge.f32.partialorder %v142, 0.0
    %vm150 = vcmp.ge.f32.partialorder %v144, 0.0
    %vm151 = vcmp.ge.f32.partialorder %v146, 0.0
    %v152 = vmul.f32 %v140, 0.2
    %v153 = vmul.f32 %v142, 0.2
    %v154 = vmul.f32 %v144, 0.2
    %v155 = vmul.f32 %v146, 0.2
    %v156 = vsel %vm148, %v140, %v152
    %v157 = vsel %vm149, %v142, %v153
    %v158 = vsel %vm150, %v144, %v154
    %v159 = vsel %vm151, %v146, %v155
    %v160 = vpack.c.bf16 %v158, %v156
    %v161 = vpack.c.bf16 %v159, %v157
    %163 = vset.pattern.permute.xlu0 0
    %164 = vperm.xlu0 %163, %v56
    %v165 = vpop.permute.xlu0 %164
    %168 = vset.pattern.permute.xlu0 0
    %169 = vperm.xlu0 %168, %v57
    %v170 = vpop.permute.xlu0 %169
    %173 = vset.pattern.permute.xlu0 0
    %174 = vperm.xlu0 %173, %v58
    %v175 = vpop.permute.xlu0 %174
    %178 = vset.pattern.permute.xlu0 0
    %179 = vperm.xlu0 %178, %v59
    %v180 = vpop.permute.xlu0 %179
    %v186 = vunpack.c.l.b16 %v24
    %v187 = vunpack.c.l.b16 %v25
    %v188 = vunpack.c.l.b16 %v26
    %v189 = vunpack.c.l.b16 %v27
    %v190 = vpack.c.b16 %v187, %v186
    %v191 = vpack.c.b16 %v189, %v188
    %v193 = vsel %vm101, %v190, 0
    %v196 = vsel %vm101, %v191, 0
    %198 = vmatprep.subr.bf16.mxu0 %v161
    %199 = vmatpush1.bf16.msra.mxu0 %v160
    %200 = vmatprep.subr.bf16.mxu0 0
    %201 = vmatpush1.bf16.msra.mxu0 0
    %202 = vmatprep.subr.bf16.mxu0 0
    %203 = vmatpush1.bf16.msra.mxu0 0
    %204 = vmatprep.subr.bf16.mxu0 0
    %205 = vmatpush1.bf16.msra.mxu0 0
    %206 = vmatprep.subr.bf16.mxu0 0
    %207 = vmatpush1.bf16.msra.mxu0 0
    %208 = vmatprep.subr.bf16.mxu0 0
    %209 = vmatpush1.bf16.msra.mxu0 0
    %210 = vmatprep.subr.bf16.mxu0 0
    %211 = vmatpush1.bf16.msra.mxu0 0
    %212 = vmatprep.subr.bf16.mxu0 0
    %213 = vmatpush1.bf16.msra.mxu0 0
    %214 = vmatprep.subr.bf16.mxu0 0
    %215 = vmatpush1.bf16.msra.mxu0 0
    %216 = vmatprep.subr.bf16.mxu0 0
    %217 = vmatpush1.bf16.msra.mxu0 0
    %218 = vmatprep.subr.bf16.mxu0 0
    %219 = vmatpush1.bf16.msra.mxu0 0
    %220 = vmatprep.subr.bf16.mxu0 0
    %221 = vmatpush1.bf16.msra.mxu0 0
    %222 = vmatprep.subr.bf16.mxu0 0
    %223 = vmatpush1.bf16.msra.mxu0 0
    %224 = vmatprep.subr.bf16.mxu0 0
    %225 = vmatpush1.bf16.msra.mxu0 0
    %226 = vmatprep.subr.bf16.mxu0 0
    %227 = vmatpush1.bf16.msra.mxu0 0
    %228 = vmatprep.subr.bf16.mxu0 0
    %229 = vmatpush1.bf16.msra.mxu0 0
    %230 = vmatprep.mubr.bf16.mxu0 0
    %231 = vmatmul.mubr.bf16.gmra.mrb[0].mxu0 %v193
    %v232 = vpop.f32.mrb[0].mxu0
    %v233 = vadd.f32 %v165, %v232
    %v234 = vpop.f32.mrb[0].mxu0
    %v235 = vadd.f32 %v165, %v234
    %v236 = vpop.f32.mrb[0].mxu0
    %v237 = vadd.f32 %v170, %v236
    %v238 = vpop.f32.mrb[0].mxu0
    %v239 = vadd.f32 %v170, %v238
    %240 = vmatprep.mubr.bf16.mxu0 0
    %241 = vmatmul.mubr.bf16.gmra.mrb[0].mxu0 %v196
    %v242 = vpop.f32.mrb[0].mxu0
    %v243 = vadd.f32 %v175, %v242
    %v244 = vpop.f32.mrb[0].mxu0
    %v245 = vadd.f32 %v175, %v244
    %v246 = vpop.f32.mrb[0].mxu0
    %v247 = vadd.f32 %v180, %v246
    %v248 = vpop.f32.mrb[0].mxu0
    %v249 = vadd.f32 %v180, %v248
    %250 = vdwg.mxu0
    %vm251 = vcmp.ge.f32.partialorder %v233, 0.0
    %vm252 = vcmp.ge.f32.partialorder %v235, 0.0
    %vm253 = vcmp.ge.f32.partialorder %v237, 0.0
    %vm254 = vcmp.ge.f32.partialorder %v239, 0.0
    %vm255 = vcmp.ge.f32.partialorder %v243, 0.0
    %vm256 = vcmp.ge.f32.partialorder %v245, 0.0
    %vm257 = vcmp.ge.f32.partialorder %v247, 0.0
    %vm258 = vcmp.ge.f32.partialorder %v249, 0.0
    %v259 = vmul.f32 %v233, 0.2
    %v260 = vmul.f32 %v235, 0.2
    %v261 = vmul.f32 %v237, 0.2
    %v262 = vmul.f32 %v239, 0.2
    %v263 = vmul.f32 %v243, 0.2
    %v264 = vmul.f32 %v245, 0.2
    %v265 = vmul.f32 %v247, 0.2
    %v266 = vmul.f32 %v249, 0.2
    %v267 = vsel %vm251, %v233, %v259
    %v268 = vsel %vm252, %v235, %v260
    %v269 = vsel %vm253, %v237, %v261
    %v270 = vsel %vm254, %v239, %v262
    %v271 = vsel %vm255, %v243, %v263
    %v272 = vsel %vm256, %v245, %v264
    %v273 = vsel %vm257, %v247, %v265
    %v274 = vsel %vm258, %v249, %v266
    %v275 = vpack.c.bf16 %v269, %v267
    %v276 = vpack.c.bf16 %v270, %v268
    %v277 = vpack.c.bf16 %v273, %v271
    %v278 = vpack.c.bf16 %v274, %v272
    %280 = vset.pattern.permute.xlu0 0
    %281 = vperm.xlu0 %280, %v60
    %v282 = vpop.permute.xlu0 %281
    %285 = vset.pattern.permute.xlu0 0
    %286 = vperm.xlu0 %285, %v61
    %v287 = vpop.permute.xlu0 %286
    %290 = vset.pattern.permute.xlu0 0
    %291 = vperm.xlu0 %290, %v62
    %v292 = vpop.permute.xlu0 %291
    %295 = vset.pattern.permute.xlu0 0
    %296 = vperm.xlu0 %295, %v63
    %v297 = vpop.permute.xlu0 %296
    %300 = vset.pattern.permute.xlu0 0
    %301 = vperm.xlu0 %300, %v64
    %v302 = vpop.permute.xlu0 %301
    %305 = vset.pattern.permute.xlu0 0
    %306 = vperm.xlu0 %305, %v65
    %v307 = vpop.permute.xlu0 %306
    %310 = vset.pattern.permute.xlu0 0
    %311 = vperm.xlu0 %310, %v66
    %v312 = vpop.permute.xlu0 %311
    %315 = vset.pattern.permute.xlu0 0
    %316 = vperm.xlu0 %315, %v67
    %v317 = vpop.permute.xlu0 %316
    %v327 = vunpack.c.l.b16 %v28
    %v328 = vunpack.c.l.b16 %v29
    %v329 = vunpack.c.l.b16 %v30
    %v330 = vunpack.c.l.b16 %v31
    %v331 = vunpack.c.l.b16 %v32
    %v332 = vunpack.c.l.b16 %v33
    %v333 = vunpack.c.l.b16 %v34
    %v334 = vunpack.c.l.b16 %v35
    %v335 = vpack.c.b16 %v328, %v327
    %v336 = vpack.c.b16 %v330, %v329
    %v337 = vpack.c.b16 %v332, %v331
    %v338 = vpack.c.b16 %v334, %v333
    %vm339 = vcmask 261120
    %v341 = vsel %vm339, %v335, 0
    %v344 = vsel %vm339, %v336, 0
    %v347 = vsel %vm339, %v337, 0
    %v350 = vsel %vm339, %v338, 0
    %352 = vmatprep.subr.bf16.mxu0 %v276
    %353 = vmatpush1.bf16.msra.mxu0 %v275
    %354 = vmatprep.subr.bf16.mxu0 %v278
    %355 = vmatpush1.bf16.msra.mxu0 %v277
    %356 = vmatprep.subr.bf16.mxu0 0
    %357 = vmatpush1.bf16.msra.mxu0 0
    %358 = vmatprep.subr.bf16.mxu0 0
    %359 = vmatpush1.bf16.msra.mxu0 0
    %360 = vmatprep.subr.bf16.mxu0 0
    %361 = vmatpush1.bf16.msra.mxu0 0
    %362 = vmatprep.subr.bf16.mxu0 0
    %363 = vmatpush1.bf16.msra.mxu0 0
    %364 = vmatprep.subr.bf16.mxu0 0
    %365 = vmatpush1.bf16.msra.mxu0 0
    %366 = vmatprep.subr.bf16.mxu0 0
    %367 = vmatpush1.bf16.msra.mxu0 0
    %368 = vmatprep.subr.bf16.mxu0 0
    %369 = vmatpush1.bf16.msra.mxu0 0
    %370 = vmatprep.subr.bf16.mxu0 0
    %371 = vmatpush1.bf16.msra.mxu0 0
    %372 = vmatprep.subr.bf16.mxu0 0
    %373 = vmatpush1.bf16.msra.mxu0 0
    %374 = vmatprep.subr.bf16.mxu0 0
    %375 = vmatpush1.bf16.msra.mxu0 0
    %376 = vmatprep.subr.bf16.mxu0 0
    %377 = vmatpush1.bf16.msra.mxu0 0
    %378 = vmatprep.subr.bf16.mxu0 0
    %379 = vmatpush1.bf16.msra.mxu0 0
    %380 = vmatprep.subr.bf16.mxu0 0
    %381 = vmatpush1.bf16.msra.mxu0 0
    %382 = vmatprep.subr.bf16.mxu0 0
    %383 = vmatpush1.bf16.msra.mxu0 0
    %384 = vmatprep.mubr.bf16.mxu0 0
    %385 = vmatmul.mubr.bf16.gmra.mrb[0].mxu0 %v341
    %v386 = vpop.f32.mrb[0].mxu0
    %v387 = vadd.f32 %v282, %v386
    %v388 = vpop.f32.mrb[0].mxu0
    %v389 = vadd.f32 %v282, %v388
    %v390 = vpop.f32.mrb[0].mxu0
    %v391 = vadd.f32 %v287, %v390
    %v392 = vpop.f32.mrb[0].mxu0
    %v393 = vadd.f32 %v287, %v392
    %394 = vmatprep.mubr.bf16.mxu0 0
    %395 = vmatmul.mubr.bf16.gmra.mrb[0].mxu0 %v344
    %v396 = vpop.f32.mrb[0].mxu0
    %v397 = vadd.f32 %v292, %v396
    %v398 = vpop.f32.mrb[0].mxu0
    %v399 = vadd.f32 %v292, %v398
    %v400 = vpop.f32.mrb[0].mxu0
    %v401 = vadd.f32 %v297, %v400
    %v402 = vpop.f32.mrb[0].mxu0
    %v403 = vadd.f32 %v297, %v402
    %404 = vmatprep.mubr.bf16.mxu0 0
    %405 = vmatmul.mubr.bf16.gmra.mrb[0].mxu0 %v347
    %v406 = vpop.f32.mrb[0].mxu0
    %v407 = vadd.f32 %v302, %v406
    %v408 = vpop.f32.mrb[0].mxu0
    %v409 = vadd.f32 %v302, %v408
    %v410 = vpop.f32.mrb[0].mxu0
    %v411 = vadd.f32 %v307, %v410
    %v412 = vpop.f32.mrb[0].mxu0
    %v413 = vadd.f32 %v307, %v412
    %414 = vmatprep.mubr.bf16.mxu0 0
    %415 = vmatmul.mubr.bf16.gmra.mrb[0].mxu0 %v350
    %v416 = vpop.f32.mrb[0].mxu0
    %v417 = vadd.f32 %v312, %v416
    %v418 = vpop.f32.mrb[0].mxu0
    %v419 = vadd.f32 %v312, %v418
    %v420 = vpop.f32.mrb[0].mxu0
    %v421 = vadd.f32 %v317, %v420
    %v422 = vpop.f32.mrb[0].mxu0
    %v423 = vadd.f32 %v317, %v422
    %424 = vdwg.mxu0
    %vm425 = vcmp.ge.f32.partialorder %v387, 0.0
    %vm426 = vcmp.ge.f32.partialorder %v389, 0.0
    %vm427 = vcmp.ge.f32.partialorder %v391, 0.0
    %vm428 = vcmp.ge.f32.partialorder %v393, 0.0
    %vm429 = vcmp.ge.f32.partialorder %v397, 0.0
    %vm430 = vcmp.ge.f32.partialorder %v399, 0.0
    %vm431 = vcmp.ge.f32.partialorder %v401, 0.0
    %vm432 = vcmp.ge.f32.partialorder %v403, 0.0
    %vm433 = vcmp.ge.f32.partialorder %v407, 0.0
    %vm434 = vcmp.ge.f32.partialorder %v409, 0.0
    %vm435 = vcmp.ge.f32.partialorder %v411, 0.0
    %vm436 = vcmp.ge.f32.partialorder %v413, 0.0
    %vm437 = vcmp.ge.f32.partialorder %v417, 0.0
    %vm438 = vcmp.ge.f32.partialorder %v419, 0.0
    %vm439 = vcmp.ge.f32.partialorder %v421, 0.0
    %vm440 = vcmp.ge.f32.partialorder %v423, 0.0
    %v441 = vmul.f32 %v387, 0.2
    %v442 = vmul.f32 %v389, 0.2
    %v443 = vmul.f32 %v391, 0.2
    %v444 = vmul.f32 %v393, 0.2
    %v445 = vmul.f32 %v397, 0.2
    %v446 = vmul.f32 %v399, 0.2
    %v447 = vmul.f32 %v401, 0.2
    %v448 = vmul.f32 %v403, 0.2
    %v449 = vmul.f32 %v407, 0.2
    %v450 = vmul.f32 %v409, 0.2
    %v451 = vmul.f32 %v411, 0.2
    %v452 = vmul.f32 %v413, 0.2
    %v453 = vmul.f32 %v417, 0.2
    %v454 = vmul.f32 %v419, 0.2
    %v455 = vmul.f32 %v421, 0.2
    %v456 = vmul.f32 %v423, 0.2
    %v457 = vsel %vm425, %v387, %v441
    %v458 = vsel %vm426, %v389, %v442
    %v459 = vsel %vm427, %v391, %v443
    %v460 = vsel %vm428, %v393, %v444
    %v461 = vsel %vm429, %v397, %v445
    %v462 = vsel %vm430, %v399, %v446
    %v463 = vsel %vm431, %v401, %v447
    %v464 = vsel %vm432, %v403, %v448
    %v465 = vsel %vm433, %v407, %v449
    %v466 = vsel %vm434, %v409, %v450
    %v467 = vsel %vm435, %v411, %v451
    %v468 = vsel %vm436, %v413, %v452
    %v469 = vsel %vm437, %v417, %v453
    %v470 = vsel %vm438, %v419, %v454
    %v471 = vsel %vm439, %v421, %v455
    %v472 = vsel %vm440, %v423, %v456
    %v473 = vpack.c.bf16 %v459, %v457
    %v474 = vpack.c.bf16 %v460, %v458
    %v475 = vpack.c.bf16 %v463, %v461
    %v476 = vpack.c.bf16 %v464, %v462
    %v477 = vpack.c.bf16 %v467, %v465
    %v478 = vpack.c.bf16 %v468, %v466
    %v479 = vpack.c.bf16 %v471, %v469
    %v480 = vpack.c.bf16 %v472, %v470
    %482 = vset.pattern.permute.xlu0 0
    %483 = vperm.xlu0 %482, %v68
    %v484 = vpop.permute.xlu0 %483
    %487 = vset.pattern.permute.xlu0 0
    %488 = vperm.xlu0 %487, %v69
    %v489 = vpop.permute.xlu0 %488
    %492 = vset.pattern.permute.xlu0 0
    %493 = vperm.xlu0 %492, %v70
    %v494 = vpop.permute.xlu0 %493
    %497 = vset.pattern.permute.xlu0 0
    %498 = vperm.xlu0 %497, %v71
    %v499 = vpop.permute.xlu0 %498
    %502 = vset.pattern.permute.xlu0 0
    %503 = vperm.xlu0 %502, %v72
    %v504 = vpop.permute.xlu0 %503
    %507 = vset.pattern.permute.xlu0 0
    %508 = vperm.xlu0 %507, %v73
    %v509 = vpop.permute.xlu0 %508
    %512 = vset.pattern.permute.xlu0 0
    %513 = vperm.xlu0 %512, %v74
    %v514 = vpop.permute.xlu0 %513
    %517 = vset.pattern.permute.xlu0 0
    %518 = vperm.xlu0 %517, %v75
    %v519 = vpop.permute.xlu0 %518
    %v529 = vunpack.c.l.b16 %v36
    %v530 = vunpack.c.l.b16 %v37
    %v531 = vunpack.c.l.b16 %v38
    %v532 = vunpack.c.l.b16 %v39
    %v533 = vunpack.c.l.b16 %v40
    %v534 = vunpack.c.l.b16 %v41
    %v535 = vunpack.c.l.b16 %v42
    %v536 = vunpack.c.l.b16 %v43
    %v537 = vpack.c.b16 %v530, %v529
    %v538 = vpack.c.b16 %v532, %v531
    %v539 = vpack.c.b16 %v534, %v533
    %v540 = vpack.c.b16 %v536, %v535
    %vm541 = vcmask 523264
    %v543 = vsel %vm541, %v537, 0
    %v546 = vsel %vm541, %v538, 0
    %v549 = vsel %vm541, %v539, 0
    %v552 = vsel %vm541, %v540, 0
    %554 = vmatprep.subr.bf16.mxu0 %v474
    %555 = vmatpush1.bf16.msra.mxu0 %v473
    %556 = vmatprep.subr.bf16.mxu0 %v476
    %557 = vmatpush1.bf16.msra.mxu0 %v475
    %558 = vmatprep.subr.bf16.mxu0 %v478
    %559 = vmatpush1.bf16.msra.mxu0 %v477
    %560 = vmatprep.subr.bf16.mxu0 %v480
    %561 = vmatpush1.bf16.msra.mxu0 %v479
    %562 = vmatprep.subr.bf16.mxu0 0
    %563 = vmatpush1.bf16.msra.mxu0 0
    %564 = vmatprep.subr.bf16.mxu0 0
    %565 = vmatpush1.bf16.msra.mxu0 0
    %566 = vmatprep.subr.bf16.mxu0 0
    %567 = vmatpush1.bf16.msra.mxu0 0
    %568 = vmatprep.subr.bf16.mxu0 0
    %569 = vmatpush1.bf16.msra.mxu0 0
    %570 = vmatprep.subr.bf16.mxu0 0
    %571 = vmatpush1.bf16.msra.mxu0 0
    %572 = vmatprep.subr.bf16.mxu0 0
    %573 = vmatpush1.bf16.msra.mxu0 0
    %574 = vmatprep.subr.bf16.mxu0 0
    %575 = vmatpush1.bf16.msra.mxu0 0
    %576 = vmatprep.subr.bf16.mxu0 0
    %577 = vmatpush1.bf16.msra.mxu0 0
    %578 = vmatprep.subr.bf16.mxu0 0
    %579 = vmatpush1.bf16.msra.mxu0 0
    %580 = vmatprep.subr.bf16.mxu0 0
    %581 = vmatpush1.bf16.msra.mxu0 0
    %582 = vmatprep.subr.bf16.mxu0 0
    %583 = vmatpush1.bf16.msra.mxu0 0
    %584 = vmatprep.subr.bf16.mxu0 0
    %585 = vmatpush1.bf16.msra.mxu0 0
    %586 = vmatprep.mubr.bf16.mxu0 0
    %587 = vmatmul.mubr.bf16.gmra.mrb[0].mxu0 %v543
    %v588 = vpop.f32.mrb[0].mxu0
    %v589 = vadd.f32 %v484, %v588
    %v590 = vpop.f32.mrb[0].mxu0
    %v591 = vadd.f32 %v484, %v590
    %v592 = vpop.f32.mrb[0].mxu0
    %v593 = vadd.f32 %v489, %v592
    %v594 = vpop.f32.mrb[0].mxu0
    %v595 = vadd.f32 %v489, %v594
    %596 = vmatprep.mubr.bf16.mxu0 0
    %597 = vmatmul.mubr.bf16.gmra.mrb[0].mxu0 %v546
    %v598 = vpop.f32.mrb[0].mxu0
    %v599 = vadd.f32 %v494, %v598
    %v600 = vpop.f32.mrb[0].mxu0
    %v601 = vadd.f32 %v494, %v600
    %v602 = vpop.f32.mrb[0].mxu0
    %v603 = vadd.f32 %v499, %v602
    %v604 = vpop.f32.mrb[0].mxu0
    %v605 = vadd.f32 %v499, %v604
    %606 = vmatprep.mubr.bf16.mxu0 0
    %607 = vmatmul.mubr.bf16.gmra.mrb[0].mxu0 %v549
    %v608 = vpop.f32.mrb[0].mxu0
    %v609 = vadd.f32 %v504, %v608
    %v610 = vpop.f32.mrb[0].mxu0
    %v611 = vadd.f32 %v504, %v610
    %v612 = vpop.f32.mrb[0].mxu0
    %v613 = vadd.f32 %v509, %v612
    %v614 = vpop.f32.mrb[0].mxu0
    %v615 = vadd.f32 %v509, %v614
    %616 = vmatprep.mubr.bf16.mxu0 0
    %617 = vmatmul.mubr.bf16.gmra.mrb[0].mxu0 %v552
    %v618 = vpop.f32.mrb[0].mxu0
    %v619 = vadd.f32 %v514, %v618
    %v620 = vpop.f32.mrb[0].mxu0
    %v621 = vadd.f32 %v514, %v620
    %v622 = vpop.f32.mrb[0].mxu0
    %v623 = vadd.f32 %v519, %v622
    %v624 = vpop.f32.mrb[0].mxu0
    %v625 = vadd.f32 %v519, %v624
    %626 = vdwg.mxu0
    %vm627 = vcmp.ge.f32.partialorder %v589, 0.0
    %vm628 = vcmp.ge.f32.partialorder %v591, 0.0
    %vm629 = vcmp.ge.f32.partialorder %v593, 0.0
    %vm630 = vcmp.ge.f32.partialorder %v595, 0.0
    %vm631 = vcmp.ge.f32.partialorder %v599, 0.0
    %vm632 = vcmp.ge.f32.partialorder %v601, 0.0
    %vm633 = vcmp.ge.f32.partialorder %v603, 0.0
    %vm634 = vcmp.ge.f32.partialorder %v605, 0.0
    %vm635 = vcmp.ge.f32.partialorder %v609, 0.0
    %vm636 = vcmp.ge.f32.partialorder %v611, 0.0
    %vm637 = vcmp.ge.f32.partialorder %v613, 0.0
    %vm638 = vcmp.ge.f32.partialorder %v615, 0.0
    %vm639 = vcmp.ge.f32.partialorder %v619, 0.0
    %vm640 = vcmp.ge.f32.partialorder %v621, 0.0
    %vm641 = vcmp.ge.f32.partialorder %v623, 0.0
    %vm642 = vcmp.ge.f32.partialorder %v625, 0.0
    %v643 = vmul.f32 %v589, 0.2
    %v644 = vmul.f32 %v591, 0.2
    %v645 = vmul.f32 %v593, 0.2
    %v646 = vmul.f32 %v595, 0.2
    %v647 = vmul.f32 %v599, 0.2
    %v648 = vmul.f32 %v601, 0.2
    %v649 = vmul.f32 %v603, 0.2
    %v650 = vmul.f32 %v605, 0.2
    %v651 = vmul.f32 %v609, 0.2
    %v652 = vmul.f32 %v611, 0.2
    %v653 = vmul.f32 %v613, 0.2
    %v654 = vmul.f32 %v615, 0.2
    %v655 = vmul.f32 %v619, 0.2
    %v656 = vmul.f32 %v621, 0.2
    %v657 = vmul.f32 %v623, 0.2
    %v658 = vmul.f32 %v625, 0.2
    %v659 = vsel %vm627, %v589, %v643
    %v660 = vsel %vm628, %v591, %v644
    %v661 = vsel %vm629, %v593, %v645
    %v662 = vsel %vm630, %v595, %v646
    %v663 = vsel %vm631, %v599, %v647
    %v664 = vsel %vm632, %v601, %v648
    %v665 = vsel %vm633, %v603, %v649
    %v666 = vsel %vm634, %v605, %v650
    %v667 = vsel %vm635, %v609, %v651
    %v668 = vsel %vm636, %v611, %v652
    %v669 = vsel %vm637, %v613, %v653
    %v670 = vsel %vm638, %v615, %v654
    %v671 = vsel %vm639, %v619, %v655
    %v672 = vsel %vm640, %v621, %v656
    %v673 = vsel %vm641, %v623, %v657
    %v674 = vsel %vm642, %v625, %v658
    %v675 = vpack.c.bf16 %v661, %v659
    %v676 = vpack.c.bf16 %v662, %v660
    %v677 = vpack.c.bf16 %v665, %v663
    %v678 = vpack.c.bf16 %v666, %v664
    %v679 = vpack.c.bf16 %v669, %v667
    %v680 = vpack.c.bf16 %v670, %v668
    %v681 = vpack.c.bf16 %v673, %v671
    %v682 = vpack.c.bf16 %v674, %v672
    %684 = vset.pattern.permute.xlu0 0
    %685 = vperm.xlu0 %684, %v76
    %v686 = vpop.permute.xlu0 %685
    %689 = vset.pattern.permute.xlu0 0
    %690 = vperm.xlu0 %689, %v77
    %v691 = vpop.permute.xlu0 %690
    %694 = vset.pattern.permute.xlu0 0
    %695 = vperm.xlu0 %694, %v78
    %v696 = vpop.permute.xlu0 %695
    %699 = vset.pattern.permute.xlu0 0
    %700 = vperm.xlu0 %699, %v79
    %v701 = vpop.permute.xlu0 %700
    %704 = vset.pattern.permute.xlu0 0
    %705 = vperm.xlu0 %704, %v80
    %v706 = vpop.permute.xlu0 %705
    %709 = vset.pattern.permute.xlu0 0
    %710 = vperm.xlu0 %709, %v81
    %v711 = vpop.permute.xlu0 %710
    %714 = vset.pattern.permute.xlu0 0
    %715 = vperm.xlu0 %714, %v82
    %v716 = vpop.permute.xlu0 %715
    %719 = vset.pattern.permute.xlu0 0
    %720 = vperm.xlu0 %719, %v83
    %v721 = vpop.permute.xlu0 %720
    %v731 = vunpack.c.l.b16 %v44
    %v732 = vunpack.c.l.b16 %v45
    %v733 = vunpack.c.l.b16 %v46
    %v734 = vunpack.c.l.b16 %v47
    %v735 = vunpack.c.l.b16 %v48
    %v736 = vunpack.c.l.b16 %v49
    %v737 = vunpack.c.l.b16 %v50
    %v738 = vunpack.c.l.b16 %v51
    %v739 = vpack.c.b16 %v732, %v731
    %v740 = vpack.c.b16 %v734, %v733
    %v741 = vpack.c.b16 %v736, %v735
    %v742 = vpack.c.b16 %v738, %v737
    %v744 = vsel %vm541, %v739, 0
    %v747 = vsel %vm541, %v740, 0
    %v750 = vsel %vm541, %v741, 0
    %v753 = vsel %vm541, %v742, 0
    %755 = vmatprep.subr.bf16.mxu0 %v676
    %756 = vmatpush1.bf16.msra.mxu0 %v675
    %757 = vmatprep.subr.bf16.mxu0 %v678
    %758 = vmatpush1.bf16.msra.mxu0 %v677
    %759 = vmatprep.subr.bf16.mxu0 %v680
    %760 = vmatpush1.bf16.msra.mxu0 %v679
    %761 = vmatprep.subr.bf16.mxu0 %v682
    %762 = vmatpush1.bf16.msra.mxu0 %v681
    %763 = vmatprep.subr.bf16.mxu0 0
    %764 = vmatpush1.bf16.msra.mxu0 0
    %765 = vmatprep.subr.bf16.mxu0 0
    %766 = vmatpush1.bf16.msra.mxu0 0
    %767 = vmatprep.subr.bf16.mxu0 0
    %768 = vmatpush1.bf16.msra.mxu0 0
    %769 = vmatprep.subr.bf16.mxu0 0
    %770 = vmatpush1.bf16.msra.mxu0 0
    %771 = vmatprep.subr.bf16.mxu0 0
    %772 = vmatpush1.bf16.msra.mxu0 0
    %773 = vmatprep.subr.bf16.mxu0 0
    %774 = vmatpush1.bf16.msra.mxu0 0
    %775 = vmatprep.subr.bf16.mxu0 0
    %776 = vmatpush1.bf16.msra.mxu0 0
    %777 = vmatprep.subr.bf16.mxu0 0
    %778 = vmatpush1.bf16.msra.mxu0 0
    %779 = vmatprep.subr.bf16.mxu0 0
    %780 = vmatpush1.bf16.msra.mxu0 0
    %781 = vmatprep.subr.bf16.mxu0 0
    %782 = vmatpush1.bf16.msra.mxu0 0
    %783 = vmatprep.subr.bf16.mxu0 0
    %784 = vmatpush1.bf16.msra.mxu0 0
    %785 = vmatprep.subr.bf16.mxu0 0
    %786 = vmatpush1.bf16.msra.mxu0 0
    %787 = vmatprep.mubr.bf16.mxu0 0
    %788 = vmatmul.mubr.bf16.gmra.mrb[0].mxu0 %v744
    %v789 = vpop.f32.mrb[0].mxu0
    %v790 = vadd.f32 %v686, %v789
    %v791 = vpop.f32.mrb[0].mxu0
    %v792 = vadd.f32 %v686, %v791
    %v793 = vpop.f32.mrb[0].mxu0
    %v794 = vadd.f32 %v691, %v793
    %v795 = vpop.f32.mrb[0].mxu0
    %v796 = vadd.f32 %v691, %v795
    %797 = vmatprep.mubr.bf16.mxu0 0
    %798 = vmatmul.mubr.bf16.gmra.mrb[0].mxu0 %v747
    %v799 = vpop.f32.mrb[0].mxu0
    %v800 = vadd.f32 %v696, %v799
    %v801 = vpop.f32.mrb[0].mxu0
    %v802 = vadd.f32 %v696, %v801
    %v803 = vpop.f32.mrb[0].mxu0
    %v804 = vadd.f32 %v701, %v803
    %v805 = vpop.f32.mrb[0].mxu0
    %v806 = vadd.f32 %v701, %v805
    %807 = vmatprep.mubr.bf16.mxu0 0
    %808 = vmatmul.mubr.bf16.gmra.mrb[0].mxu0 %v750
    %v809 = vpop.f32.mrb[0].mxu0
    %v810 = vadd.f32 %v706, %v809
    %v811 = vpop.f32.mrb[0].mxu0
    %v812 = vadd.f32 %v706, %v811
    %v813 = vpop.f32.mrb[0].mxu0
    %v814 = vadd.f32 %v711, %v813
    %v815 = vpop.f32.mrb[0].mxu0
    %v816 = vadd.f32 %v711, %v815
    %817 = vmatprep.mubr.bf16.mxu0 0
    %818 = vmatmul.mubr.bf16.gmra.mrb[0].mxu0 %v753
    %v819 = vpop.f32.mrb[0].mxu0
    %v820 = vadd.f32 %v716, %v819
    %v821 = vpop.f32.mrb[0].mxu0
    %v822 = vadd.f32 %v716, %v821
    %v823 = vpop.f32.mrb[0].mxu0
    %v824 = vadd.f32 %v721, %v823
    %v825 = vpop.f32.mrb[0].mxu0
    %v826 = vadd.f32 %v721, %v825
    %827 = vdwg.mxu0
    %vm828 = vcmp.ge.f32.partialorder %v790, 0.0
    %vm829 = vcmp.ge.f32.partialorder %v792, 0.0
    %vm830 = vcmp.ge.f32.partialorder %v794, 0.0
    %vm831 = vcmp.ge.f32.partialorder %v796, 0.0
    %vm832 = vcmp.ge.f32.partialorder %v800, 0.0
    %vm833 = vcmp.ge.f32.partialorder %v802, 0.0
    %vm834 = vcmp.ge.f32.partialorder %v804, 0.0
    %vm835 = vcmp.ge.f32.partialorder %v806, 0.0
    %vm836 = vcmp.ge.f32.partialorder %v810, 0.0
    %vm837 = vcmp.ge.f32.partialorder %v812, 0.0
    %vm838 = vcmp.ge.f32.partialorder %v814, 0.0
    %vm839 = vcmp.ge.f32.partialorder %v816, 0.0
    %vm840 = vcmp.ge.f32.partialorder %v820, 0.0
    %vm841 = vcmp.ge.f32.partialorder %v822, 0.0
    %vm842 = vcmp.ge.f32.partialorder %v824, 0.0
    %vm843 = vcmp.ge.f32.partialorder %v826, 0.0
    %v844 = vmul.f32 %v790, 0.2
    %v845 = vmul.f32 %v792, 0.2
    %v846 = vmul.f32 %v794, 0.2
    %v847 = vmul.f32 %v796, 0.2
    %v848 = vmul.f32 %v800, 0.2
    %v849 = vmul.f32 %v802, 0.2
    %v850 = vmul.f32 %v804, 0.2
    %v851 = vmul.f32 %v806, 0.2
    %v852 = vmul.f32 %v810, 0.2
    %v853 = vmul.f32 %v812, 0.2
    %v854 = vmul.f32 %v814, 0.2
    %v855 = vmul.f32 %v816, 0.2
    %v856 = vmul.f32 %v820, 0.2
    %v857 = vmul.f32 %v822, 0.2
    %v858 = vmul.f32 %v824, 0.2
    %v859 = vmul.f32 %v826, 0.2
    %v860 = vsel %vm828, %v790, %v844
    %v861 = vsel %vm829, %v792, %v845
    %v862 = vsel %vm830, %v794, %v846
    %v863 = vsel %vm831, %v796, %v847
    %v864 = vsel %vm832, %v800, %v848
    %v865 = vsel %vm833, %v802, %v849
    %v866 = vsel %vm834, %v804, %v850
    %v867 = vsel %vm835, %v806, %v851
    %v868 = vsel %vm836, %v810, %v852
    %v869 = vsel %vm837, %v812, %v853
    %v870 = vsel %vm838, %v814, %v854
    %v871 = vsel %vm839, %v816, %v855
    %v872 = vsel %vm840, %v820, %v856
    %v873 = vsel %vm841, %v822, %v857
    %v874 = vsel %vm842, %v824, %v858
    %v875 = vsel %vm843, %v826, %v859
    %v876 = vpack.c.bf16 %v862, %v860
    %v877 = vpack.c.bf16 %v863, %v861
    %v878 = vpack.c.bf16 %v866, %v864
    %v879 = vpack.c.bf16 %v867, %v865
    %v880 = vpack.c.bf16 %v870, %v868
    %v881 = vpack.c.bf16 %v871, %v869
    %v882 = vpack.c.bf16 %v874, %v872
    %v883 = vpack.c.bf16 %v875, %v873
    %884 = vst [vmem:[#allocation2] sm:$0xff] %v876
    %885 = vst [vmem:[#allocation2 + $0x8] sm:$0xff] %v877
    %886 = vst [vmem:[#allocation2 + $0x10] sm:$0xff] %v878
    %887 = vst [vmem:[#allocation2 + $0x18] sm:$0xff] %v879
    %888 = vst [vmem:[#allocation2 + $0x20] sm:$0xff] %v880
    %889 = vst [vmem:[#allocation2 + $0x28] sm:$0xff] %v881
    %890 = vst [vmem:[#allocation2 + $0x30] sm:$0xff] %v882
    %891 = vst [vmem:[#allocation2 + $0x38] sm:$0xff] %v883
    %892 = vst [vmem:[#allocation2 + $0x40] sm:$0xff] %v20
    %893 = vst [vmem:[#allocation2 + $0x48] sm:$0xff] %v21
    %v894 = vld [vmem:[#allocation2] sm:$0xff]
    %v895 = vld [vmem:[#allocation2 + $0x8] sm:$0xff]
    %v896 = vld [vmem:[#allocation2 + $0x10] sm:$0xff]
    %v897 = vld [vmem:[#allocation2 + $0x18] sm:$0xff]
    %v898 = vld [vmem:[#allocation2 + $0x20] sm:$0xff]
    %v899 = vld [vmem:[#allocation2 + $0x28] sm:$0xff]
    %v900 = vld [vmem:[#allocation2 + $0x30] sm:$0xff]
    %v901 = vld [vmem:[#allocation2 + $0x38] sm:$0xff]
    %v902 = vld [vmem:[#allocation2 + $0x40] sm:$0xff]
    %v903 = vld [vmem:[#allocation2 + $0x48] sm:$0xff]
    %905 = vset.pattern.permute.xlu0 0
    %906 = vperm.xlu0 %905, %v84
    %v907 = vpop.permute.xlu0 %906
    %910 = vset.pattern.permute.xlu0 0
    %911 = vperm.xlu0 %910, %v85
    %v912 = vpop.permute.xlu0 %911
    %v916 = vunpack.c.l.b16 %v52
    %v917 = vunpack.c.l.b16 %v53
    %v918 = vpack.c.b16 %v917, %v916
    %vm919 = vcmask 654336
    %v921 = vsel %vm919, %v918, 0
    %923 = vmatprep.subr.bf16.mxu0 %v895
    %924 = vmatpush1.bf16.msra.mxu0 %v894
    %925 = vmatprep.subr.bf16.mxu0 %v897
    %926 = vmatpush1.bf16.msra.mxu0 %v896
    %927 = vmatprep.subr.bf16.mxu0 %v899
    %928 = vmatpush1.bf16.msra.mxu0 %v898
    %929 = vmatprep.subr.bf16.mxu0 %v901
    %930 = vmatpush1.bf16.msra.mxu0 %v900
    %931 = vmatprep.subr.bf16.mxu0 %v903
    %932 = vmatpush1.bf16.msra.mxu0 %v902
    %933 = vmatprep.subr.bf16.mxu0 0
    %934 = vmatpush1.bf16.msra.mxu0 0
    %935 = vmatprep.subr.bf16.mxu0 0
    %936 = vmatpush1.bf16.msra.mxu0 0
    %937 = vmatprep.subr.bf16.mxu0 0
    %938 = vmatpush1.bf16.msra.mxu0 0
    %939 = vmatprep.subr.bf16.mxu0 0
    %940 = vmatpush1.bf16.msra.mxu0 0
    %941 = vmatprep.subr.bf16.mxu0 0
    %942 = vmatpush1.bf16.msra.mxu0 0
    %943 = vmatprep.subr.bf16.mxu0 0
    %944 = vmatpush1.bf16.msra.mxu0 0
    %945 = vmatprep.subr.bf16.mxu0 0
    %946 = vmatpush1.bf16.msra.mxu0 0
    %947 = vmatprep.subr.bf16.mxu0 0
    %948 = vmatpush1.bf16.msra.mxu0 0
    %949 = vmatprep.subr.bf16.mxu0 0
    %950 = vmatpush1.bf16.msra.mxu0 0
    %951 = vmatprep.subr.bf16.mxu0 0
    %952 = vmatpush1.bf16.msra.mxu0 0
    %953 = vmatprep.subr.bf16.mxu0 0
    %954 = vmatpush1.bf16.msra.mxu0 0
    %955 = vmatprep.mubr.bf16.mxu0 0
    %956 = vmatmul.mubr.bf16.gmra.mrb[0].mxu0 %v921
    %v957 = vpop.f32.mrb[0].mxu0
    %v958 = vadd.f32 %v907, %v957
    %v959 = vpop.f32.mrb[0].mxu0
    %v960 = vadd.f32 %v907, %v959
    %v961 = vpop.f32.mrb[0].mxu0
    %v962 = vadd.f32 %v912, %v961
    %v963 = vpop.f32.mrb[0].mxu0
    %v964 = vadd.f32 %v912, %v963
    %965 = vdwg.mxu0
    %v966 = vmul.f32 %v958, 2.0
    %v967 = vmul.f32 %v960, 2.0
    %v968 = vmul.f32 %v962, 2.0
    %v969 = vmul.f32 %v964, 2.0
    %v970 = vtanh.pop %v966
    %v971 = vtanh.pop %v967
    %v972 = vtanh.pop %v968
    %v973 = vtanh.pop %v969
    %v974 = vmul.f32 %v970, 1.05
    %v975 = vmul.f32 %v971, 1.05
    %v976 = vmul.f32 %v972, 1.05
    %v977 = vmul.f32 %v973, 1.05
    %v978 = vpack.c.bf16 %v976, %v974
    %v979 = vpack.c.bf16 %v977, %v975
    %v982 = vunpack.c.l.b16 %v978
    %v983 = vunpack.c.l.b16 %v979
    %v984 = vunpack.c.h.b16 %v978
    %v985 = vunpack.c.h.b16 %v979
    %v986 = vpack.c.b16 %v983, %v982
    %v987 = vpack.c.b16 %v985, %v984
    %990 = vst [vmem:[#allocation3] sm:$0xff] %v986
    %991 = vst [vmem:[#allocation3 + $0x8] sm:$0xff] %v987
    // Predicated region
    $region14: #{tpu_custom_call.1} parent=1 // pred_check
      _
    $region15: #{tpu_custom_call.1} parent=1 // pred_check_branch
      %993 = sbr.rel (0) target = $region17
    $region16: #{tpu_custom_call.1} parent=1 // pred_region
      %s995 = ssub.s32 256, 256
      %996 = vsyncadd [#allocation4], %s995
      %s997 = sshll.u32 [#allocation3], 4
      %s998 = int_to_ptr.vmem [resolvable:$true] %s997
      %1003 = dma.vmem_to_hbm [thread:$0]  %s998, 256, %s3, [#allocation4], 128, 128, 8
    $region17: #{tpu_custom_call.1} parent=1 // pred_fallthru
      _
    // Predicated region
    $region18: #{tpu_custom_call.1} parent=1 // pred_check
      _
    $region19: #{tpu_custom_call.1} parent=1 // pred_check_branch
      %1005 = sbr.rel (0) target = $region21
    $region20: #{tpu_custom_call.1} parent=1 // pred_region
      %1006 = dma.done [#allocation4], 256
    $region21: #{tpu_custom_call.1} parent=1 // pred_fallthru
      _
    %1007 = vsyncpa [#allocation4], 1

</llo_original>
